<compile_context>
chip_gen: v5e
topology: v5e:2x2
jax: 0.10.0
libtpu: 0.0.40
codegen_flags: <defaults>
</compile_context>

<pallas_src>
import functools

import numpy as np
import jax
import jax.numpy as jnp
from jax.experimental import pallas as pl
from jax.experimental.pallas import tpu as pltpu


# MXU operand dtype: bf16 operands + f32 accumulation run the v5e/v6e/v7x MXU
# at full rate and halve im2col-patch / weight VMEM traffic.
MATMUL_DTYPE = jnp.bfloat16

_K_MAX = 9 * 128          # widest im2col K in the net (Cin = 128)
_TAP_OFFSETS = tuple((dh, dw) for dh in (-1, 0, 1) for dw in (-1, 0, 1))


# ----------------------------------------------------------------------------
# One-off probe: pltpu.roll rotation sign vs np.roll (keeps the XLU-roll based
# tap construction correct regardless of the convention in this jax version).
# ----------------------------------------------------------------------------
def _probe_roll_sign():
    def k(x_ref, o_ref):
        o_ref[...] = pltpu.roll(x_ref[...], 1, 1)

    x = np.tile(np.arange(128, dtype=np.float32)[None, :], (8, 1))
    y = pl.pallas_call(
        k, out_shape=jax.ShapeDtypeStruct((8, 128), jnp.float32))(x)
    # np.roll semantics => rolled[1] == 0.0 ; flipped convention => 2.0
    return 1 if float(y[0, 1]) == 0.0 else -1


_ROLL_SIGN = _probe_roll_sign()


# ----------------------------------------------------------------------------
# Host-side constant builders (border masks / pooling / upsampling operators)
# ----------------------------------------------------------------------------
def _tap_masks(H, W, reps):
    """(9, reps*H*W) f32 validity masks for the 9 taps of a SAME 3x3 conv.

    Tiled `reps` times so a batch fused along lanes shares one mask; the mask
    also zeroes every tap that would wrap across an image / batch boundary
    after the lane rotation."""
    n = np.arange(H * W)
    h, w = n // W, n % W
    rows = []
    for dh, dw in _TAP_OFFSETS:
        valid = ((h + dh >= 0) & (h + dh < H) & (w + dw >= 0) & (w + dw < W))
        rows.append(valid.astype(np.float32))
    return jnp.asarray(np.tile(np.stack(rows), (1, reps)))


def _pool_matrix(H, W, reps):
    """Block-diagonal 2x2 average pool as a right-matmul operator (bf16 exact)."""
    Hl, Wl = H // 2, W // 2
    P = np.zeros((H * W, Hl * Wl), np.float32)
    for h in range(H):
        for w in range(W):
            P[h * W + w, (h // 2) * Wl + (w // 2)] = 0.25
    P = np.kron(np.eye(reps, dtype=np.float32), P)
    return jnp.asarray(P, dtype=MATMUL_DTYPE)


def _up_matrix(Hl, Wl, reps):
    """Block-diagonal 2x nearest-neighbour upsample as a right-matmul op."""
    H, W = 2 * Hl, 2 * Wl
    U = np.zeros((Hl * Wl, H * W), np.float32)
    for h in range(H):
        for w in range(W):
            U[(h // 2) * Wl + (w // 2), h * W + w] = 1.0
    U = np.kron(np.eye(reps, dtype=np.float32), U)
    return jnp.asarray(U, dtype=MATMUL_DTYPE)


# ----------------------------------------------------------------------------
# In-kernel helpers
# ----------------------------------------------------------------------------
def _mm(a, b):
    """MXU matmul: MATMUL_DTYPE operands, f32 accumulation."""
    return jax.lax.dot_general(
        a.astype(MATMUL_DTYPE), b.astype(MATMUL_DTYPE),
        dimension_numbers=(((1,), (0,)), ((), ())),
        preferred_element_type=jnp.float32)


def _conv3x3(x, w_ref, b_ref, row, cout, mask_rows, width, relu=True):
    """SAME 3x3 conv on (Cin, N) as one fat-K im2col MXU matmul.

    Tap shifts are XLU lane rotations (pltpu.roll) + precomputed border masks
    (no slice+zero-fill+concat copies on the store slot).  Weights / biases
    come from the packed buffers; `row`/`cout` are static offsets."""
    cin, n = x.shape
    taps = []
    for k, (dh, dw) in enumerate(_TAP_OFFSETS):
        d = dh * width + dw
        if d == 0:
            s = x
        else:
            s = pltpu.roll(x, (-_ROLL_SIGN * d) % n, 1) * mask_rows[k]
        taps.append(s.astype(MATMUL_DTYPE))          # cast at matmul boundary
    patches = jnp.concatenate(taps, axis=0)          # (9*Cin, N)
    w = w_ref[row:row + cout, :9 * cin]              # (Cout, 9*Cin), static
    out = jax.lax.dot_general(w, patches, (((1,), (0,)), ((), ())),
                              preferred_element_type=jnp.float32)
    out = out + b_ref[row:row + cout, :]             # f32 bias
    if relu:
        out = jnp.maximum(out, 0.0)
    return out


def _curvenet_kernel(xf_ref, xsf_ref, xc_ref,
                     mask_f_ref, mask_sf_ref, mask_c_ref,
                     pool_f_ref, pool_sf_ref, up_c_ref, up_sf_ref,
                     w_ref, b_ref, o_ref,
                     *, width_f, width_sf, width_c, layers, head_row):
    # Load each per-scale mask block once; slice rows, reused by every conv
    # at that scale.
    def mask_rows(ref):
        m = ref[...]
        return [m[k:k + 1, :] for k in range(9)]

    m_f = mask_rows(mask_f_ref)
    m_sf = mask_rows(mask_sf_ref)
    m_c = mask_rows(mask_c_ref)

    it = iter(layers)

    def double_conv(x, rows, width):
        r1, c1 = next(it)
        r2, c2 = next(it)
        x = _conv3x3(x, w_ref, b_ref, r1, c1, rows, width)
        return _conv3x3(x, w_ref, b_ref, r2, c2, rows, width)

    xf_in = xf_ref[0]          # (8, Nf)   channel-padded, batch fused in lanes
    xsf_in = xsf_ref[0]        # (8, Nsf)
    xc_in = xc_ref[0]          # (8, Nc)

    # ----- encoder -----
    xf = double_conv(xf_in, m_f, width_f)                            # (32, Nf)
    xf_hi = xf
    # TODO(synk): finestCoronaeDecLayer is an FFT-based curvelet decomposition
    # (source unavailable); its low band is approximated by a 2x2 avg pool.
    xf_low = _mm(xf, pool_f_ref[...])                                # (32, Nsf)

    xsf = double_conv(xsf_in, m_sf, width_sf)                        # (32, Nsf)
    xsf = double_conv(jnp.concatenate([xsf, xf_low], axis=0),
                      m_sf, width_sf)                                # (64, Nsf)
    xsf_hi = xsf
    # TODO(synk): semiFinestCoronaeDecLayer approximated the same way.
    xsf_low = _mm(xsf, pool_sf_ref[...])                             # (64, Nc)

    xc = double_conv(xc_in, m_c, width_c)                            # (64, Nc)
    xc = double_conv(jnp.concatenate([xc, xsf_low], axis=0),
                     m_c, width_c)                                   # (128, Nc)
    xc = double_conv(xc, m_c, width_c)                               # (128, Nc)
    xc = double_conv(xc, m_c, width_c)                               # (64, Nc)
    # TODO(synk): coarseUpsampling (FFT-based) approximated by 2x NN upsample.
    xc_up = _mm(xc, up_c_ref[...])                                   # (64, Nsf)

    # ----- decoder -----
    xsf_ = double_conv(jnp.concatenate([xsf_hi, xc_up], axis=0),
                       m_sf, width_sf)                               # (64, Nsf)
    xsf_ = double_conv(xsf_, m_sf, width_sf)                         # (32, Nsf)
    # TODO(synk): semifinestUpsampling approximated by 2x NN upsample.
    xsf_up = _mm(xsf_, up_sf_ref[...])                               # (32, Nf)

    xf_ = double_conv(jnp.concatenate([xf_hi, xsf_up], axis=0),
                      m_f, width_f)                                  # (32, Nf)

    # Fused convF / convSF / convC 1x1 heads: (6, 32) @ (32, Nf) + bias.
    head = _mm(w_ref[head_row:head_row + 6, :32], xf_)
    head = head + b_ref[head_row:head_row + 6, :]                    # (6, Nf)
    o_ref[...] = head[None].astype(o_ref.dtype)


# ----------------------------------------------------------------------------
# Parameter construction (deterministic, in-script; natural conv layouts)
# ----------------------------------------------------------------------------
def _init_conv3x3(key, cin, cout):
    kw, kb = jax.random.split(key)
    w = jax.random.normal(kw, (3, 3, cin, cout), jnp.float32) / np.sqrt(9.0 * cin)
    b = 0.01 * jax.random.normal(kb, (cout,), jnp.float32)
    return w, b


def _init_conv1x1(key, cin, cout):
    kw, kb = jax.random.split(key)
    w = jax.random.normal(kw, (cout, cin), jnp.float32) / np.sqrt(cin)
    b = 0.01 * jax.random.normal(kb, (cout,), jnp.float32)
    return w, b


def _init_double_conv(key, cin, cout):
    k1, k2 = jax.random.split(key)
    return {"c1": _init_conv3x3(k1, cin, cout),
            "c2": _init_conv3x3(k2, cout, cout)}


def init_curvenet_params(key):
    names_dc = [("conv_f1", 2, 32), ("conv_f2", 64, 32),
                ("conv_sf1", 2, 32), ("conv_sf2", 64, 64),
                ("conv_sf3", 128, 64), ("conv_sf4", 64, 32),
                ("conv_c1", 2, 64), ("conv_c2", 128, 128),
                ("conv_c3", 128, 128), ("conv_c4", 128, 64)]
    keys = jax.random.split(key, len(names_dc) + 3)
    params = {}
    for k, (name, cin, cout) in zip(keys[:len(names_dc)], names_dc):
        params[name] = _init_double_conv(k, cin, cout)
    # convF / convSF / convC: three 1x1 convs 32 -> 2 on the same tensor, so
    # they fuse exactly into one (6, 32) head.
    wF, bF = _init_conv1x1(keys[-3], 32, 2)
    wSF, bSF = _init_conv1x1(keys[-2], 32, 2)
    wC, bC = _init_conv1x1(keys[-1], 32, 2)
    params["head_w"] = jnp.concatenate([wF, wSF, wC], axis=0)    # (6, 32)
    params["head_b"] = jnp.concatenate([bF, bSF, bC], axis=0)    # (6,)
    return params


# ----------------------------------------------------------------------------
# Weight packing (2 contiguous buffers, static in-kernel offsets)
# ----------------------------------------------------------------------------
_FORWARD_ORDER = ("conv_f1", "conv_sf1", "conv_sf2", "conv_c1", "conv_c2",
                  "conv_c3", "conv_c4", "conv_sf3", "conv_sf4", "conv_f2")


def _round_up(n, m):
    return ((n + m - 1) // m) * m


def _flat_conv_w(w):
    """(3,3,Cin,Cout) -> (Cout, 9*Cin_padded) im2col layout (tap-major)."""
    _, _, cin, cout = w.shape
    cin_p = _round_up(cin, 8)
    if cin_p != cin:
        w = jnp.pad(w, ((0, 0), (0, 0), (0, cin_p - cin), (0, 0)))
    return jnp.transpose(w, (3, 0, 1, 2)).reshape(cout, 9 * cin_p)


def _pack_params(params):
    """All conv weights into one (rows, 9*128) MATMUL_DTYPE slab (layers stacked
    along sublanes in consumption order, K zero-padded to the common width) and
    all biases into one (rows, 1) f32 column."""
    wblocks, bblocks, meta = [], [], []
    row = 0
    for name in _FORWARD_ORDER:
        for part in ("c1", "c2"):
            w, b = params[name][part]
            cout = w.shape[-1]
            wf = _flat_conv_w(w)
            wblocks.append(jnp.pad(wf, ((0, 0), (0, _K_MAX - wf.shape[1]))))
            bblocks.append(b.reshape(-1, 1))
            meta.append((row, cout))
            row += cout                       # all Cout multiples of 8
    head_row = row
    hw = params["head_w"]
    wblocks.append(jnp.pad(hw, ((0, 2), (0, _K_MAX - hw.shape[1]))))
    bblocks.append(jnp.pad(params["head_b"].reshape(-1, 1), ((0, 2), (0, 0))))
    w_packed = jnp.concatenate(wblocks, axis=0).astype(MATMUL_DTYPE)
    b_packed = jnp.concatenate(bblocks, axis=0).astype(jnp.float32)
    return w_packed, b_packed, tuple(meta), head_row


# ----------------------------------------------------------------------------
# Fused forward (single pallas_call)
# ----------------------------------------------------------------------------
def curvenet_forward(params, finestIm, semiIm, coarseIm, num_groups=None):
    """NCHW inputs -> (B, 6, Hf, Wf), one fused Pallas kernel.

    The batch is fused into the lane dimension; `num_groups > 1` splits the
    fused batch over a "parallel" grid (e.g. 2 for v7x's two TensorCores when
    B is large)."""
    B, Cimg, Hf, Wf = finestIm.shape
    _, _, Hsf, Wsf = semiIm.shape
    _, _, Hc, Wc = coarseIm.shape
    if num_groups is None:
        num_groups = 2 if (B % 2 == 0 and B >= 4) else 1
    assert B % num_groups == 0, (B, num_groups)
    bpg = B // num_groups
    Nf, Nsf, Nc = bpg * Hf * Wf, bpg * Hsf * Wsf, bpg * Hc * Wc
    Cp = _round_up(Cimg, 8)

    def group_img(x):
        b, c, h, w = x.shape
        x = x.astype(jnp.float32).reshape(num_groups, bpg, c, h * w)
        x = jnp.transpose(x, (0, 2, 1, 3)).reshape(num_groups, c, bpg * h * w)
        return jnp.pad(x, ((0, 0), (0, Cp - c), (0, 0)))

    imgs = [group_img(finestIm), group_img(semiIm), group_img(coarseIm)]

    consts = [_tap_masks(Hf, Wf, bpg), _tap_masks(Hsf, Wsf, bpg),
              _tap_masks(Hc, Wc, bpg),
              _pool_matrix(Hf, Wf, bpg), _pool_matrix(Hsf, Wsf, bpg),
              _up_matrix(Hc, Wc, bpg), _up_matrix(Hsf, Wsf, bpg)]

    w_packed, b_packed, layer_meta, head_row = _pack_params(params)
    inputs = imgs + consts + [w_packed, b_packed]

    img_specs = [
        pl.BlockSpec((1, Cp, Nf), lambda g: (g, 0, 0)),
        pl.BlockSpec((1, Cp, Nsf), lambda g: (g, 0, 0)),
        pl.BlockSpec((1, Cp, Nc), lambda g: (g, 0, 0)),
    ]

    def const_spec(a):
        return pl.BlockSpec(a.shape, lambda g, _nd=a.ndim: (0,) * _nd)

    in_specs = img_specs + [const_spec(a) for a in inputs[3:]]

    kernel = functools.partial(
        _curvenet_kernel, width_f=Wf, width_sf=Wsf, width_c=Wc,
        layers=layer_meta, head_row=head_row)

    out = pl.pallas_call(
        kernel,
        out_shape=jax.ShapeDtypeStruct((num_groups, 6, Nf), jnp.float32),
        grid=(num_groups,),
        in_specs=in_specs,
        out_specs=pl.BlockSpec((1, 6, Nf), lambda g: (g, 0, 0)),
        compiler_params=pltpu.CompilerParams(
            dimension_semantics=("parallel",),
            # ~25 MiB estimated footprint (bf16 weight slab + block-diagonal
            # pool/up operators + peak im2col temporaries) + headroom; well
            # under v7x's 64 MiB / TensorCore.
            vmem_limit_bytes=40 * 1024 * 1024),
    )(*inputs)

    out = out.reshape(num_groups, 6, bpg, Hf * Wf)
    out = jnp.transpose(out, (0, 2, 1, 3)).reshape(B, 6, Hf, Wf)
    return out


# ----------------------------------------------------------------------------
# Pure-JAX reference (same stand-ins, same bf16-operand / f32-accumulation
# quantization points as the kernel), for validation
# ----------------------------------------------------------------------------
def curvenet_reference(params, finestIm, semiIm, coarseIm):
    hp = jax.lax.Precision.HIGHEST

    def conv(x, w, b):
        y = jax.lax.conv_general_dilated(
            x.astype(MATMUL_DTYPE), w.astype(MATMUL_DTYPE), (1, 1), "SAME",
            dimension_numbers=("NCHW", "HWIO", "NCHW"),
            preferred_element_type=jnp.float32, precision=hp)
        return jnp.maximum(y + b[None, :, None, None], 0.0)

    def dc(x, p):
        x = conv(x, *p["c1"])
        return conv(x, *p["c2"])

    def pool(x):
        x = x.astype(MATMUL_DTYPE).astype(jnp.float32)   # match kernel quant.
        b, c, h, w = x.shape
        return x.reshape(b, c, h // 2, 2, w // 2, 2).mean(axis=(3, 5))

    def up(x):
        return jnp.repeat(jnp.repeat(x, 2, axis=2), 2, axis=3)

    f32 = lambda t: t.astype(jnp.float32)
    xf = dc(f32(finestIm), params["conv_f1"])
    xf_hi, xf_low = xf, pool(xf)
    xsf = dc(f32(semiIm), params["conv_sf1"])
    xsf = dc(jnp.concatenate([xsf, xf_low], axis=1), params["conv_sf2"])
    xsf_hi, xsf_low = xsf, pool(xsf)
    xc = dc(f32(coarseIm), params["conv_c1"])
    xc = dc(jnp.concatenate([xc, xsf_low], axis=1), params["conv_c2"])
    xc = dc(xc, params["conv_c3"])
    xc = dc(xc, params["conv_c4"])
    xc_up = up(xc)
    xsf_ = dc(jnp.concatenate([xsf_hi, xc_up], axis=1), params["conv_sf3"])
    xsf_ = dc(xsf_, params["conv_sf4"])
    xsf_up = up(xsf_)
    xf_ = dc(jnp.concatenate([xf_hi, xsf_up], axis=1), params["conv_f2"])
    out = jnp.einsum("oc,bchw->bohw",
                     params["head_w"].astype(MATMUL_DTYPE),
                     xf_.astype(MATMUL_DTYPE),
                     preferred_element_type=jnp.float32, precision=hp)
    return out + params["head_b"][None, :, None, None]


# ----------------------------------------------------------------------------
if __name__ == "__main__":
    key = jax.random.PRNGKey(0)
    kp, k1, k2, k3 = jax.random.split(key, 4)

    B = 2
    Hf = Wf = 32      # finest scale
    Hsf = Wsf = 16    # semi-finest scale (finest / 2)
    Hc = Wc = 8       # coarse scale (semi-finest / 2)

    params = init_curvenet_params(kp)
    finestIm = jax.random.normal(k1, (B, 2, Hf, Wf), jnp.float32)
    semiIm = jax.random.normal(k2, (B, 2, Hsf, Wsf), jnp.float32)
    coarseIm = jax.random.normal(k3, (B, 2, Hc, Wc), jnp.float32)

    fwd = jax.jit(curvenet_forward)
    out = jax.block_until_ready(fwd(params, finestIm, semiIm, coarseIm))

    assert out.shape == (B, 6, Hf, Wf), out.shape
    assert bool(jnp.all(jnp.isfinite(out)))

    ref = jax.block_until_ready(
        jax.jit(curvenet_reference)(params, finestIm, semiIm, coarseIm))
    max_err = float(jnp.max(jnp.abs(out - ref)))
    # bf16 MXU operands (matched in the reference) leave only f32
    # accumulation-order noise; 2e-2 is a generous bound.
    assert max_err < 2e-2, f"mismatch vs pure-JAX reference: {max_err}"

    print("KERNEL_OK")
</pallas_src>

<mosaic_0001>
module attributes {stable_mosaic.version = 11 : i64} {
  func.func @k(%arg0: memref<8x128xf32, #tpu.memory_space<vmem>>, %arg1: memref<8x128xf32, #tpu.memory_space<vmem>>) attributes {dimension_semantics = [], scalar_prefetch = 0 : i64, scratch_operands = 0 : i64, tpu.core_type = #tpu.core_type<tc>} {
    %c0 = arith.constant 0 : index
    %c0_0 = arith.constant 0 : index
    %0 = vector.load %arg0[%c0, %c0_0] : memref<8x128xf32, #tpu.memory_space<vmem>>, vector<8x128xf32>
    %c1_i32 = arith.constant 1 : i32
    %1 = tpu.dynamic_rotate %0 by %c1_i32 dim 1 : vector<8x128xf32>, i32 -> vector<8x128xf32>
    %c0_1 = arith.constant 0 : index
    %c0_2 = arith.constant 0 : index
    %2 = vector.load %arg1[%c0_1, %c0_2] : memref<8x128xf32, #tpu.memory_space<vmem>>, vector<8x128xf32>
    tpu.vector_store %arg1[%c0_1, %c0_2], %1 {strides = array<i32>} : memref<8x128xf32, #tpu.memory_space<vmem>>, vector<8x128xf32>,
    return
  }
}

</mosaic_0001>

<llo_original>
// kernel: tpu_custom_call.1
$region0: #{tpu_custom_call.1}
  #allocation0 [shape = 'u32[]', space=smem, size = 0x4, offset = 0x4, fixed_abs, tag = 'smem constant byte address 0x4 - core index']
  #allocation1 [shape = 'u32[72,128]{1,0:T(1,128)}', space=vmem, size = 0x9000, scoped, tag = 'internal scratch']
  %s0 = inlined_call_operand.hbm [shape: f32[8,128], index: 0, kind: input, shape index: {}]
  %s1 = inlined_call_operand.hbm [shape: f32[8,128], index: 1, kind: output, shape index: {}]
  %s2 = sld [smem:[#allocation0]]
  $region18: #{tpu_custom_call.1} parent=0
    _
  %s4 = ssub.s32 1, %s2
  %s5 = scalar_select 0, %s4, %s2
  $region1: #{tpu_custom_call.1} parent=0
    #allocation2 [shape = 'u8[4096]{0}', space=vmem, size = 0x1000, scoped, tag = 'input window, operand 0, single buffered']
    #allocation3 [shape = 's32[1]{0}', space=sflag, size = 0x4, scoped, tag = 'scoped memory for tpu_custom_call.1']
    #allocation4 [shape = 's32[1]{0}', space=sflag, size = 0x4, scoped, tag = 'scoped memory for tpu_custom_call.1']
    #allocation5 [shape = 'u8[4096]{0}', space=vmem, size = 0x1000, scoped, tag = 'output window, operand 0, single buffered']
    %6 = vsyncpa [#allocation3], 0
    %7 = vsyncpa [#allocation4], 0
    // Predicated region
    $region2: #{tpu_custom_call.1} parent=1 // pred_check
      _
    $region3: #{tpu_custom_call.1} parent=1 // pred_check_branch
      %9 = sbr.rel (0) target = $region5
    $region4: #{tpu_custom_call.1} parent=1 // pred_region
      %11 = vsyncadd [#allocation3], 0
      %s13 = sshll.u32 %s0, 4
      %s14 = int_to_ptr.hbm [resolvable:$true] %s13
      %s15 = sshll.u32 [#allocation2], 4
      %s16 = int_to_ptr.vmem [resolvable:$true] %s15
      %18 = dma.hbm_to_vmem [thread:$0]  %s14, 128, %s16, [#allocation3]
    $region5: #{tpu_custom_call.1} parent=1 // pred_fallthru
      _
    // Predicated region
    $region6: #{tpu_custom_call.1} parent=1 // pred_check
      _
    $region7: #{tpu_custom_call.1} parent=1 // pred_check_branch
      %20 = sbr.rel (0) target = $region9
    $region8: #{tpu_custom_call.1} parent=1 // pred_region
      %22 = dma.done [#allocation3], 128
    $region9: #{tpu_custom_call.1} parent=1 // pred_fallthru
      _
    %v23 = vld [vmem:[#allocation2] sm:$0xff]
    %24 = vrot.lane.b32.xlu0 %v23, 1
    %v25 = vpop.permute.xlu0 %24
    %26 = vst [vmem:[#allocation5] sm:$0xff] %v25
    // Predicated region
    $region10: #{tpu_custom_call.1} parent=1 // pred_check
      _
    $region11: #{tpu_custom_call.1} parent=1 // pred_check_branch
      %28 = sbr.rel (0) target = $region13
    $region12: #{tpu_custom_call.1} parent=1 // pred_region
      %30 = vsyncadd [#allocation4], 0
      %s32 = sshll.u32 [#allocation5], 4
      %s33 = int_to_ptr.vmem [resolvable:$true] %s32
      %s34 = sshll.u32 %s1, 4
      %s35 = int_to_ptr.hbm [resolvable:$true] %s34
      %37 = dma.vmem_to_hbm [thread:$0]  %s33, 128, %s35, [#allocation4]
    $region13: #{tpu_custom_call.1} parent=1 // pred_fallthru
      _
    // Predicated region
    $region14: #{tpu_custom_call.1} parent=1 // pred_check
      _
    $region15: #{tpu_custom_call.1} parent=1 // pred_check_branch
      %39 = sbr.rel (0) target = $region17
    $region16: #{tpu_custom_call.1} parent=1 // pred_region
      %41 = dma.done [#allocation4], 128
    $region17: #{tpu_custom_call.1} parent=1 // pred_fallthru
      _
    %42 = vsyncpa [#allocation3], 1
    %43 = vsyncpa [#allocation4], 1

</llo_original>
